<compile_context>
chip_gen: v7x
topology: tpu7x:2x2x1
jax: 0.10.0
libtpu: 0.0.40
codegen_flags: <defaults>
</compile_context>

<pallas_src>
import jax
import jax.numpy as jnp
from jax.experimental import pallas as pl
from jax.experimental.pallas import tpu as pltpu


def _ce_kernel(x_ref, w1_ref, t1_ref, w2_ref, t2_ref, o_ref):
    # x_ref : (1, C, THW)  input tile (spatial pixels on the lane axis)
    # w1_ref: (Cr, C)   bf16, BN1 scale pre-folded
    # t1_ref: (Cr, 1)   f32 shift (conv bias + BN folded)
    # w2_ref: (Cr, Cr)  bf16, BN2 scale pre-folded
    # t2_ref: (Cr, 1)   f32 shift
    # o_ref : (1, Cr, THW)
    #
    # Cast the activation tile to bf16 in-kernel (cheap VPU cast on VMEM data)
    # so both matmuls take the bf16 MXU path; doing the cast in the wrapper
    # would add an extra full HBM read+write of x outside the kernel.
    x = x_ref[0].astype(jnp.bfloat16)                       # (C, THW)

    # NOTE: for very small C (K dim) the first matmul underfills the MXU, but
    # this op is HBM-bound so the MXU is off the critical path anyway.
    h = jnp.dot(w1_ref[...], x, preferred_element_type=jnp.float32)
    h = jnp.maximum(h + t1_ref[...], 0.0)                   # (Cr, THW) f32

    y = jnp.dot(w2_ref[...], h.astype(jnp.bfloat16),
                preferred_element_type=jnp.float32)
    y = jnp.maximum(y + t2_ref[...], 0.0)

    o_ref[0] = y.astype(o_ref.dtype)


def _pick_tile_hw(HW, C, Cr, n_batch,
                  vmem_budget=12 * 1024 * 1024, max_tile=32768):
    """Largest lane tile that fits the VMEM budget and divides the spatial dim."""
    # Per spatial element: double-buffered bf16 x-tile + double-buffered f32
    # out-tile + one live f32 intermediate.
    bytes_per_px = 2 * (C * 2) + 2 * (Cr * 4) + Cr * 4
    cap = min(max_tile, max(128, vmem_budget // bytes_per_px))
    cap -= cap % 128
    cap = max(cap, 128)

    if HW <= cap:
        # Whole spatial extent in one tile (legal even if HW % 128 != 0, since
        # the block equals the full array dim).  With a single batch image,
        # still try to expose >= 2 grid steps so v7x's two TensorCores both
        # get work via the "parallel" grid axes.
        if n_batch == 1 and HW % 256 == 0:
            return HW // 2, HW
        return HW, HW

    # Largest multiple of 128 <= cap that divides HW (no padding needed).
    t = cap
    while t >= 128:
        if HW % t == 0:
            return t, HW
        t -= 128

    # Rare ragged case: pad the spatial axis to the next multiple of 128 and
    # tile that (padded lanes are sliced off after the call).
    HW_pad = 128 * ((HW + 127) // 128)
    t = cap
    while t >= 128:
        if HW_pad % t == 0:
            return t, HW_pad
        t -= 128
    return 128, HW_pad


def channel_excitation_pallas(x_nchw, params):
    """x_nchw: (N, C, H, W). Returns (N, C*r, H, W) in x's dtype."""
    (w1, b1, g1, be1, rm1, rv1, w2, b2, g2, be2, rm2, rv2) = params
    eps = 1e-5

    N, C, H, W = x_nchw.shape
    Cr = w1.shape[0]  # C * r
    HW = H * W

    # Fold conv bias + eval-mode BN: scale goes into the weights, the rest is
    # a per-channel shift applied in-kernel.
    s1 = g1 / jnp.sqrt(rv1 + eps)                 # (Cr,)
    t1 = (b1 - rm1) * s1 + be1                    # (Cr,)
    s2 = g2 / jnp.sqrt(rv2 + eps)
    t2 = (b2 - rm2) * s2 + be2

    # Conv2d 1x1 weight (out, in, 1, 1) stays channels-first as the LEFT
    # matmul operand: (Cr, C).  BN scale folded in, cast to bf16 for the MXU.
    w1m = (w1.reshape(Cr, C) * s1[:, None]).astype(jnp.bfloat16)
    w2m = (w2.reshape(Cr, Cr) * s2[:, None]).astype(jnp.bfloat16)
    t1c = t1.reshape(Cr, 1).astype(jnp.float32)
    t2c = t2.reshape(Cr, 1).astype(jnp.float32)

    tile_hw, HW_pad = _pick_tile_hw(HW, C, Cr, N)

    # Pure reshape (contiguous) — no transpose, no extra HBM pass.
    x3 = x_nchw.reshape(N, C, HW)
    if HW_pad != HW:
        x3 = jnp.pad(x3, ((0, 0), (0, 0), (0, HW_pad - HW)))

    grid = (N, HW_pad // tile_hw)

    out3 = pl.pallas_call(
        _ce_kernel,
        out_shape=jax.ShapeDtypeStruct((N, Cr, HW_pad), x_nchw.dtype),
        grid_spec=pltpu.PrefetchScalarGridSpec(
            num_scalar_prefetch=0,
            grid=grid,
            in_specs=[
                pl.BlockSpec((1, C, tile_hw), lambda n, i: (n, 0, i)),  # x
                pl.BlockSpec((Cr, C), lambda n, i: (0, 0)),             # w1'
                pl.BlockSpec((Cr, 1), lambda n, i: (0, 0)),             # shift1
                pl.BlockSpec((Cr, Cr), lambda n, i: (0, 0)),            # w2'
                pl.BlockSpec((Cr, 1), lambda n, i: (0, 0)),             # shift2
            ],
            out_specs=pl.BlockSpec((1, Cr, tile_hw), lambda n, i: (n, 0, i)),
        ),
        compiler_params=pltpu.CompilerParams(
            dimension_semantics=("parallel", "parallel"),
            vmem_limit_bytes=32 * 1024 * 1024,
        ),
    )(x3, w1m, t1c, w2m, t2c)

    if HW_pad != HW:
        out3 = out3[:, :, :HW]
    return out3.reshape(N, Cr, H, W)


def init_params(key, in_channels, r=4):
    """Deterministic parameter init matching the module's shapes."""
    C = in_channels
    Cr = C * r
    keys = jax.random.split(key, 6)
    # Conv1: (Cr, C, 1, 1) + bias (Cr,)
    w1 = jax.random.normal(keys[0], (Cr, C, 1, 1), jnp.float32) * 0.1
    b1 = jax.random.normal(keys[1], (Cr,), jnp.float32) * 0.05
    # BN1: gamma, beta, running_mean, running_var
    g1 = jnp.ones((Cr,), jnp.float32) + 0.01 * jnp.arange(Cr, dtype=jnp.float32)
    be1 = 0.02 * jnp.arange(Cr, dtype=jnp.float32)
    rm1 = jnp.zeros((Cr,), jnp.float32)
    rv1 = jnp.ones((Cr,), jnp.float32)
    # Conv2: (Cr, Cr, 1, 1) + bias (Cr,)
    w2 = jax.random.normal(keys[2], (Cr, Cr, 1, 1), jnp.float32) * 0.1
    b2 = jax.random.normal(keys[3], (Cr,), jnp.float32) * 0.05
    # BN2
    g2 = jnp.ones((Cr,), jnp.float32) - 0.005 * jnp.arange(Cr, dtype=jnp.float32)
    be2 = -0.01 * jnp.arange(Cr, dtype=jnp.float32)
    rm2 = jnp.zeros((Cr,), jnp.float32)
    rv2 = jnp.ones((Cr,), jnp.float32)
    return (w1, b1, g1, be1, rm1, rv1, w2, b2, g2, be2, rm2, rv2)


def _reference(x_nchw, params):
    """Pure-JAX f32 reference (same math, no Pallas) for a sanity check."""
    (w1, b1, g1, be1, rm1, rv1, w2, b2, g2, be2, rm2, rv2) = params
    eps = 1e-5
    N, C, H, W = x_nchw.shape
    Cr = w1.shape[0]
    x = jnp.transpose(x_nchw, (0, 2, 3, 1)).reshape(-1, C)
    h = x @ jnp.transpose(w1.reshape(Cr, C)) + b1
    h = g1 * (h - rm1) / jnp.sqrt(rv1 + eps) + be1
    h = jnp.maximum(h, 0.0)
    y = h @ jnp.transpose(w2.reshape(Cr, Cr)) + b2
    y = g2 * (y - rm2) / jnp.sqrt(rv2 + eps) + be2
    y = jnp.maximum(y, 0.0)
    return y.reshape(N, H, W, Cr).transpose(0, 3, 1, 2)


if __name__ == "__main__":
    key = jax.random.PRNGKey(0)
    k_x, k_p = jax.random.split(key)

    N, C, H, W = 2, 4, 16, 16
    r = 4
    x = jax.random.normal(k_x, (N, C, H, W), jnp.float32)
    params = init_params(k_p, C, r)

    out = channel_excitation_pallas(x, params)
    out = jax.block_until_ready(out)

    ref = _reference(x, params)
    assert out.shape == (N, C * r, H, W), out.shape
    # bf16 matmul operands (f32 accumulation) -> loosen tolerance vs f32 ref.
    assert jnp.allclose(out, ref, atol=2e-2, rtol=2e-2), \
        float(jnp.max(jnp.abs(out - ref)))

    print("KERNEL_OK")
</pallas_src>

<mosaic_0001>
module attributes {stable_mosaic.version = 11 : i64} {
  func.func @_ce_kernel(%arg0: i32, %arg1: i32, %arg2: memref<1x4x256xf32, #tpu.memory_space<vmem>>, %arg3: memref<16x4xbf16, #tpu.memory_space<vmem>>, %arg4: memref<16x1xf32, #tpu.memory_space<vmem>>, %arg5: memref<16x16xbf16, #tpu.memory_space<vmem>>, %arg6: memref<16x1xf32, #tpu.memory_space<vmem>>, %arg7: memref<1x16x256xf32, #tpu.memory_space<vmem>>) attributes {dimension_semantics = [#tpu.dimension_semantics<parallel>, #tpu.dimension_semantics<parallel>], iteration_bounds = array<i64: 2, 1>, scalar_prefetch = 0 : i64, scratch_operands = 0 : i64, tpu.core_type = #tpu.core_type<tc>, window_params = [{transform_indices = @transform_0, window_bounds = array<i64: 1, 4, 256>}, {pipeline_mode = #tpu.pipeline_mode<synchronous>, transform_indices = @transform_1, window_bounds = array<i64: 16, 4>}, {pipeline_mode = #tpu.pipeline_mode<synchronous>, transform_indices = @transform_2, window_bounds = array<i64: 16, 1>}, {pipeline_mode = #tpu.pipeline_mode<synchronous>, transform_indices = @transform_3, window_bounds = array<i64: 16, 16>}, {pipeline_mode = #tpu.pipeline_mode<synchronous>, transform_indices = @transform_4, window_bounds = array<i64: 16, 1>}, {transform_indices = @transform_5, window_bounds = array<i64: 1, 16, 256>}]} {
    %c0 = arith.constant 0 : index
    %c0_0 = arith.constant 0 : index
    %c0_1 = arith.constant 0 : index
    %0 = vector.load %arg2[%c0, %c0_0, %c0_1] : memref<1x4x256xf32, #tpu.memory_space<vmem>>, vector<1x4x256xf32>
    %1 = vector.shape_cast %0 : vector<1x4x256xf32> to vector<4x256xf32>
    %2 = arith.truncf %1 : vector<4x256xf32> to vector<4x256xbf16>
    %c0_2 = arith.constant 0 : index
    %c0_3 = arith.constant 0 : index
    %3 = vector.load %arg3[%c0_2, %c0_3] : memref<16x4xbf16, #tpu.memory_space<vmem>>, vector<16x4xbf16>
    %cst = arith.constant dense<0.000000e+00> : vector<16x256xf32>
    %4 = tpu.matmul %3, %2, %cst {dimension_numbers = #tpu.dot_dimension_numbers<[1], [0], [0], [1], [0, 0, 1, 1], [], []>} : vector<16x4xbf16>, vector<4x256xbf16>, vector<16x256xf32> -> vector<16x256xf32>
    %c0_4 = arith.constant 0 : index
    %c0_5 = arith.constant 0 : index
    %5 = vector.load %arg4[%c0_4, %c0_5] : memref<16x1xf32, #tpu.memory_space<vmem>>, vector<16x1xf32>
    %6 = vector.broadcast %5 : vector<16x1xf32> to vector<16x256xf32>
    %7 = arith.addf %4, %6 : vector<16x256xf32>
    %cst_6 = arith.constant 0.000000e+00 : f32
    %8 = vector.broadcast %cst_6 : f32 to vector<16x256xf32>
    %9 = arith.maximumf %7, %8 : vector<16x256xf32>
    %c0_7 = arith.constant 0 : index
    %c0_8 = arith.constant 0 : index
    %10 = vector.load %arg5[%c0_7, %c0_8] : memref<16x16xbf16, #tpu.memory_space<vmem>>, vector<16x16xbf16>
    %11 = arith.truncf %9 : vector<16x256xf32> to vector<16x256xbf16>
    %cst_9 = arith.constant dense<0.000000e+00> : vector<16x256xf32>
    %12 = tpu.matmul %10, %11, %cst_9 {dimension_numbers = #tpu.dot_dimension_numbers<[1], [0], [0], [1], [0, 0, 1, 1], [], []>} : vector<16x16xbf16>, vector<16x256xbf16>, vector<16x256xf32> -> vector<16x256xf32>
    %c0_10 = arith.constant 0 : index
    %c0_11 = arith.constant 0 : index
    %13 = vector.load %arg6[%c0_10, %c0_11] : memref<16x1xf32, #tpu.memory_space<vmem>>, vector<16x1xf32>
    %14 = vector.broadcast %13 : vector<16x1xf32> to vector<16x256xf32>
    %15 = arith.addf %12, %14 : vector<16x256xf32>
    %cst_12 = arith.constant 0.000000e+00 : f32
    %16 = vector.broadcast %cst_12 : f32 to vector<16x256xf32>
    %17 = arith.maximumf %15, %16 : vector<16x256xf32>
    %c0_13 = arith.constant 0 : index
    %c0_14 = arith.constant 0 : index
    %c0_15 = arith.constant 0 : index
    %18 = vector.load %arg7[%c0_13, %c0_14, %c0_15] : memref<1x16x256xf32, #tpu.memory_space<vmem>>, vector<1x16x256xf32>
    %19 = vector.shape_cast %18 : vector<1x16x256xf32> to vector<16x256xf32>
    %20 = vector.shape_cast %17 : vector<16x256xf32> to vector<1x16x256xf32>
    tpu.vector_store %arg7[%c0_13, %c0_14, %c0_15], %20 {strides = array<i32>} : memref<1x16x256xf32, #tpu.memory_space<vmem>>, vector<1x16x256xf32>,
    return
  }
  func.func @transform_0(%arg0: i32, %arg1: i32) -> (i32, i32, i32) {
    %c0_i32 = arith.constant 0 : i32
    %c0_i32_0 = arith.constant 0 : i32
    return %arg0, %c0_i32, %arg1 : i32, i32, i32
  }
  func.func @transform_1(%arg0: i32, %arg1: i32) -> (i32, i32) {
    %c0_i32 = arith.constant 0 : i32
    %c0_i32_0 = arith.constant 0 : i32
    %c0_i32_1 = arith.constant 0 : i32
    return %c0_i32, %c0_i32_0 : i32, i32
  }
  func.func @transform_2(%arg0: i32, %arg1: i32) -> (i32, i32) {
    %c0_i32 = arith.constant 0 : i32
    %c0_i32_0 = arith.constant 0 : i32
    %c0_i32_1 = arith.constant 0 : i32
    return %c0_i32, %c0_i32_0 : i32, i32
  }
  func.func @transform_3(%arg0: i32, %arg1: i32) -> (i32, i32) {
    %c0_i32 = arith.constant 0 : i32
    %c0_i32_0 = arith.constant 0 : i32
    %c0_i32_1 = arith.constant 0 : i32
    return %c0_i32, %c0_i32_0 : i32, i32
  }
  func.func @transform_4(%arg0: i32, %arg1: i32) -> (i32, i32) {
    %c0_i32 = arith.constant 0 : i32
    %c0_i32_0 = arith.constant 0 : i32
    %c0_i32_1 = arith.constant 0 : i32
    return %c0_i32, %c0_i32_0 : i32, i32
  }
  func.func @transform_5(%arg0: i32, %arg1: i32) -> (i32, i32, i32) {
    %c0_i32 = arith.constant 0 : i32
    %c0_i32_0 = arith.constant 0 : i32
    return %arg0, %c0_i32, %arg1 : i32, i32, i32
  }
}

</mosaic_0001>

<llo_original>
// kernel: tpu_custom_call.1
$region0: #{tpu_custom_call.1}
  #allocation0 [shape = 'u32[]', space=smem, size = 0x4, offset = 0x4, fixed_abs, tag = 'smem constant byte address 0x4 - core index']
  #allocation1 [shape = 'u32[144,128]{1,0:T(1,128)}', space=vmem, size = 0x12000, scoped, tag = 'internal scratch']
  %s0 = inlined_call_operand.vmem [shape: f32[2,4,256], index: 0, kind: input, shape index: {}]
  %s1 = inlined_call_operand.vmem [shape: bf16[16,4], index: 1, kind: input, shape index: {}]
  %s2 = inlined_call_operand.vmem [shape: f32[16,1], index: 2, kind: input, shape index: {}]
  %s3 = inlined_call_operand.vmem [shape: bf16[16,16], index: 3, kind: input, shape index: {}]
  %s4 = inlined_call_operand.vmem [shape: f32[16,1], index: 4, kind: input, shape index: {}]
  %s5 = inlined_call_operand.hbm [shape: f32[2,16,256], index: 5, kind: output, shape index: {}]
  %s6 = sld [smem:[#allocation0]]
  $region53: #{tpu_custom_call.1} parent=0
    _
  %s8 = ssub.s32 1, %s6
  %s9 = scalar_select 0, %s8, %s6
  $region1: #{tpu_custom_call.1} parent=0
    #allocation2 [shape = 'u8[32768]{0}', space=vmem, size = 0x8000, scoped, tag = 'output window, operand 0']
    #allocation3 [shape = 's32[2]{0}', space=sflag, size = 0x8, scoped, tag = 'scoped memory for tpu_custom_call.1']
    %10 = vsyncpa [#allocation3], 0
    %s11 = scalar_lea.sflag [#allocation3], 1
    %12 = vsyncpa %s11, 0
    loop: start=0, step=1, limit=4
    $region2: #{tpu_custom_call.1} parent=1 // loop_pre_header
      _
    $region3: #{tpu_custom_call.1} parent=1 // loop_header
      %s14 = sphi 0, %s18
      %p15 = scmp.ge.s32.totalorder %s14, 4
      %s21 = sphi 0, %s33
      %s22 = sphi 0, %s29
      %s23 = sphi 0, %s21
      %s24 = sphi 0, %s22
      %s25 = sphi 0, %s23
      %s26 = sphi 0, %s24
      %s38 = sphi 0, %s40
      %s41 = sphi 0, %s38
      %s42 = sphi 0, %s41
      %s58 = sphi 0, %s42
      %s62 = sphi 0, %s62
      %s64 = sphi 0, %s62
      %s65 = sphi 0, %s64
      %s79 = sphi 0, %s65
      %s83 = sphi 0, %s83
      %s85 = sphi 0, %s83
      %s86 = sphi 0, %s85
      %s100 = sphi 0, %s86
      %s104 = sphi 0, %s104
      %s106 = sphi 0, %s104
      %s107 = sphi 0, %s106
      %s121 = sphi 0, %s107
      %s125 = sphi 0, %s125
      %s127 = sphi 0, %s125
      %s128 = sphi 0, %s127
      %s142 = sphi 0, %s128
      %s150 = sphi 0, %s152
      %s153 = sphi 0, %s150
      %s154 = sphi 0, %s153
      %s170 = sphi 0, %s154
    $region4: #{tpu_custom_call.1} parent=1 // loop_header_branch
      %17 = sbr.rel (%p15) target = $region8
    $region5: #{tpu_custom_call.1} parent=1 // loop_body
      %s19 = ssub.s32 %s14, 1
      %s20 = ssub.s32 %s14, 2
      %s27 = sadd.s32 1, %s22
      %p28 = scmp.ge.s32.totalorder %s27, 1
      %s29 = scalar_select %p28, 0, %s27
      %s30 = sadd.s32 1, %s21
      %s31 = scalar_select %p28, %s30, %s21
      %p32 = scmp.ge.s32.totalorder %s31, 2
      %s33 = scalar_select %p32, 0, %s31
      %s34 = ssub.s32 %s21, %s33
      %s35 = ssub.s32 %s22, %s29
      %s36 = sor.u32 %s34, %s35
      %p37 = scmp.eq.s32.totalorder %s36, 0
      %s39 = sadd.s32 %s38, 1
      %s40 = scalar_select %p37, %s38, %s39
      %p43 = pneg %p37
      %p44 = scmp.eq.s32.totalorder %s14, 1
      %p45 = por %p43, %p44
      %p46 = scmp.ne.s32.totalorder %s38, %s41
      %p47 = scmp.eq.s32.totalorder %s14, 0
      %p48 = por %p46, %p47
      %p49 = scmp.ne.s32.totalorder %s38, %s41
      %p50 = scmp.eq.s32.totalorder %s19, 1
      %p51 = por %p49, %p50
      %p52 = scmp.ne.s32.totalorder %s41, %s42
      %p53 = scmp.eq.s32.totalorder %s19, 0
      %p54 = por %p52, %p53
      %p55 = scmp.ne.s32.totalorder %s41, %s42
      %p56 = scmp.eq.s32.totalorder %s20, 1
      %p57 = por %p55, %p56
      %p59 = scmp.ne.s32.totalorder %s42, %s58
      %p60 = scmp.eq.s32.totalorder %s20, 0
      %p61 = por %p59, %p60
      %s63 = sadd.s32 %s62, 1
      %p66 = scmp.eq.s32.totalorder %s14, 1
      %p67 = scmp.ne.s32.totalorder %s62, %s64
      %p68 = scmp.eq.s32.totalorder %s14, 0
      %p69 = por %p67, %p68
      %p70 = scmp.ne.s32.totalorder %s62, %s64
      %p71 = scmp.eq.s32.totalorder %s19, 1
      %p72 = por %p70, %p71
      %p73 = scmp.ne.s32.totalorder %s64, %s65
      %p74 = scmp.eq.s32.totalorder %s19, 0
      %p75 = por %p73, %p74
      %p76 = scmp.ne.s32.totalorder %s64, %s65
      %p77 = scmp.eq.s32.totalorder %s20, 1
      %p78 = por %p76, %p77
      %p80 = scmp.ne.s32.totalorder %s65, %s79
      %p81 = scmp.eq.s32.totalorder %s20, 0
      %p82 = por %p80, %p81
      %s84 = sadd.s32 %s83, 1
      %p87 = scmp.eq.s32.totalorder %s14, 1
      %p88 = scmp.ne.s32.totalorder %s83, %s85
      %p89 = scmp.eq.s32.totalorder %s14, 0
      %p90 = por %p88, %p89
      %p91 = scmp.ne.s32.totalorder %s83, %s85
      %p92 = scmp.eq.s32.totalorder %s19, 1
      %p93 = por %p91, %p92
      %p94 = scmp.ne.s32.totalorder %s85, %s86
      %p95 = scmp.eq.s32.totalorder %s19, 0
      %p96 = por %p94, %p95
      %p97 = scmp.ne.s32.totalorder %s85, %s86
      %p98 = scmp.eq.s32.totalorder %s20, 1
      %p99 = por %p97, %p98
      %p101 = scmp.ne.s32.totalorder %s86, %s100
      %p102 = scmp.eq.s32.totalorder %s20, 0
      %p103 = por %p101, %p102
      %s105 = sadd.s32 %s104, 1
      %p108 = scmp.eq.s32.totalorder %s14, 1
      %p109 = scmp.ne.s32.totalorder %s104, %s106
      %p110 = scmp.eq.s32.totalorder %s14, 0
      %p111 = por %p109, %p110
      %p112 = scmp.ne.s32.totalorder %s104, %s106
      %p113 = scmp.eq.s32.totalorder %s19, 1
      %p114 = por %p112, %p113
      %p115 = scmp.ne.s32.totalorder %s106, %s107
      %p116 = scmp.eq.s32.totalorder %s19, 0
      %p117 = por %p115, %p116
      %p118 = scmp.ne.s32.totalorder %s106, %s107
      %p119 = scmp.eq.s32.totalorder %s20, 1
      %p120 = por %p118, %p119
      %p122 = scmp.ne.s32.totalorder %s107, %s121
      %p123 = scmp.eq.s32.totalorder %s20, 0
      %p124 = por %p122, %p123
      %s126 = sadd.s32 %s125, 1
      %p129 = scmp.eq.s32.totalorder %s14, 1
      %p130 = scmp.ne.s32.totalorder %s125, %s127
      %p131 = scmp.eq.s32.totalorder %s14, 0
      %p132 = por %p130, %p131
      %p133 = scmp.ne.s32.totalorder %s125, %s127
      %p134 = scmp.eq.s32.totalorder %s19, 1
      %p135 = por %p133, %p134
      %p136 = scmp.ne.s32.totalorder %s127, %s128
      %p137 = scmp.eq.s32.totalorder %s19, 0
      %p138 = por %p136, %p137
      %p139 = scmp.ne.s32.totalorder %s127, %s128
      %p140 = scmp.eq.s32.totalorder %s20, 1
      %p141 = por %p139, %p140
      %p143 = scmp.ne.s32.totalorder %s128, %s142
      %p144 = scmp.eq.s32.totalorder %s20, 0
      %p145 = por %p143, %p144
      %s146 = ssub.s32 %s21, %s33
      %s147 = ssub.s32 %s22, %s29
      %s148 = sor.u32 %s146, %s147
      %p149 = scmp.eq.s32.totalorder %s148, 0
      %s151 = sadd.s32 %s150, 1
      %s152 = scalar_select %p149, %s150, %s151
      %p155 = pneg %p149
      %p156 = scmp.eq.s32.totalorder %s14, 1
      %p157 = por %p155, %p156
      %p158 = scmp.ne.s32.totalorder %s150, %s153
      %p159 = scmp.eq.s32.totalorder %s14, 0
      %p160 = por %p158, %p159
      %p161 = scmp.ne.s32.totalorder %s150, %s153
      %p162 = scmp.eq.s32.totalorder %s19, 1
      %p163 = por %p161, %p162
      %p164 = scmp.ne.s32.totalorder %s153, %s154
      %p165 = scmp.eq.s32.totalorder %s19, 0
      %p166 = por %p164, %p165
      %p167 = scmp.ne.s32.totalorder %s153, %s154
      %p168 = scmp.eq.s32.totalorder %s20, 1
      %p169 = por %p167, %p168
      %p171 = scmp.ne.s32.totalorder %s154, %s170
      %p172 = scmp.eq.s32.totalorder %s20, 0
      %p173 = por %p171, %p172
      %p174 = scmp.le.s32.totalorder 1, %s14
      %p175 = scmp.lt.s32.totalorder %s14, 3
      %p176 = pnand %p174, %p175
      %p177 = pneg %p176
      // Predicated region
      $region9: #{tpu_custom_call.1} parent=5 // pred_check
        _
      $region10: #{tpu_custom_call.1} parent=5 // pred_check_branch
        %179 = sbr.rel (%p176) target = $region12
      $region11: #{tpu_custom_call.1} parent=5 // pred_region
        %s180 = ssub.s32 %s14, 1
        // Predicated region
        $region13: #{tpu_custom_call.1} parent=11 // pred_check
          %p181 = pneg %p75
        $region14: #{tpu_custom_call.1} parent=11 // pred_check_branch
          %183 = sbr.rel (%p181) target = $region16
        $region15: #{tpu_custom_call.1} parent=11 // pred_region
          _
        $region16: #{tpu_custom_call.1} parent=11 // pred_fallthru
          _
        // Predicated region
        $region17: #{tpu_custom_call.1} parent=11 // pred_check
          %p184 = pneg %p96
        $region18: #{tpu_custom_call.1} parent=11 // pred_check_branch
          %186 = sbr.rel (%p184) target = $region20
        $region19: #{tpu_custom_call.1} parent=11 // pred_region
          _
        $region20: #{tpu_custom_call.1} parent=11 // pred_fallthru
          _
        // Predicated region
        $region21: #{tpu_custom_call.1} parent=11 // pred_check
          %p187 = pneg %p117
        $region22: #{tpu_custom_call.1} parent=11 // pred_check_branch
          %189 = sbr.rel (%p187) target = $region24
        $region23: #{tpu_custom_call.1} parent=11 // pred_region
          _
        $region24: #{tpu_custom_call.1} parent=11 // pred_fallthru
          _
        // Predicated region
        $region25: #{tpu_custom_call.1} parent=11 // pred_check
          %p190 = pneg %p138
        $region26: #{tpu_custom_call.1} parent=11 // pred_check_branch
          %192 = sbr.rel (%p190) target = $region28
        $region27: #{tpu_custom_call.1} parent=11 // pred_region
          _
        $region28: #{tpu_custom_call.1} parent=11 // pred_fallthru
          _
      $region12: #{tpu_custom_call.1} parent=5 // pred_fallthru
        _
      %p193 = scmp.lt.s32.totalorder %s14, 2
      // Predicated region
      $region29: #{tpu_custom_call.1} parent=5 // pred_check
        %p194 = pneg %p193
      $region30: #{tpu_custom_call.1} parent=5 // pred_check_branch
        %196 = sbr.rel (%p194) target = $region32
      $region31: #{tpu_custom_call.1} parent=5 // pred_region
        // Predicated region
        $region33: #{tpu_custom_call.1} parent=31 // pred_check
          %p197 = pneg %p48
        $region34: #{tpu_custom_call.1} parent=31 // pred_check_branch
          %199 = sbr.rel (%p197) target = $region36
        $region35: #{tpu_custom_call.1} parent=31 // pred_region
          %s200 = smul.u32 2, %s22
          %p201 = scmp.lt.s32.totalorder %s21, 1
          %s202 = scalar_select %p201, %s21, 1
          %p203 = scmp.lt.s32.totalorder %s200, 1
          %s204 = scalar_select %p203, %s200, 1
          %s205 = smul.addr %s202, 2
          %s206 = sadd.s32 %s204, %s205
          %s207 = smul.addr %s206, 4
          %s208 = scalar_lea.vmem %s0, %s207
          %s209 = smul.u32 2, %s22
        $region36: #{tpu_custom_call.1} parent=31 // pred_fallthru
          _
      $region32: #{tpu_custom_call.1} parent=5 // pred_fallthru
        _
      %p210 = scmp.le.s32.totalorder 1, %s14
      %p211 = scmp.lt.s32.totalorder %s14, 3
      %p212 = pnand %p210, %p211
      %p213 = pneg %p212
      // Predicated region
      $region37: #{tpu_custom_call.1} parent=5 // pred_check
        _
      $region38: #{tpu_custom_call.1} parent=5 // pred_check_branch
        %215 = sbr.rel (%p212) target = $region40
      $region39: #{tpu_custom_call.1} parent=5 // pred_region
        %s216 = ssub.s32 %s14, 1
        %s217 = smul.u32 2, %s24
        %p218 = scmp.lt.s32.totalorder %s23, 1
        %s219 = scalar_select %p218, %s23, 1
        %p220 = scmp.lt.s32.totalorder %s217, 1
        %s221 = scalar_select %p220, %s217, 1
        %s222 = smul.addr %s219, 2
        %s223 = sadd.s32 %s221, %s222
        %s224 = smul.addr %s223, 4
        %s225 = scalar_lea.vmem %s0, %s224
        %p226 = pneg %p54
        %p227 = pneg %p51
        %p228 = pneg %p75
        %p229 = pneg %p72
        %p230 = pneg %p96
        %p231 = pneg %p93
        %p232 = pneg %p117
        %p233 = pneg %p114
        %p234 = pneg %p138
        %p235 = pneg %p135
        %p236 = pneg %p166
        %p237 = pneg %p163
        %s238 = sand.u32 %s153, 1
        %s239 = scalar_lea.sflag [#allocation3], %s238
        %s240 = sand.u32 %s153, 1
        %s241 = smul.addr %s240, 32
        %s242 = scalar_lea.vmem [#allocation2], %s241
        %s243 = smul.u32 2, %s24
        %p244 = scmp.lt.s32.totalorder %s23, 1
        %s245 = scalar_select %p244, %s23, 1
        %p246 = scmp.lt.s32.totalorder %s243, 1
        %s247 = scalar_select %p246, %s243, 1
        %s248 = smul.addr %s245, 2
        %s249 = sadd.s32 %s247, %s248
        %s250 = smul.addr %s249, 4
        %s251 = scalar_lea.vmem %s0, %s250
        %s252 = smul.u32 2, %s24
        %s253 = smul.u32 2, %s24
        %v255 = vld [vmem:[%s251] sm:$0xff]
        %v257 = vcombine.high %v255, %v255
        %v259 = vpack.c.bf16 %v255, %v255
        %v260 = vpack.c.bf16 %v257, %v257
        %v261 = vld [vmem:[%s1] sm:$0xf]
        %v262 = vld [vmem:[%s1 + $0x4] sm:$0xf]
        %v263 = vld [vmem:[%s2] sm:$0xff]
        %v264 = vld [vmem:[%s2 + $0x8] sm:$0xff]
        %266 = vset.pattern.permute.xlu0 0
        %267 = vperm.xlu0 %266, %v263
        %v268 = vpop.permute.xlu0 %267
        %271 = vset.pattern.permute.xlu0 0
        %272 = vperm.xlu0 %271, %v264
        %v273 = vpop.permute.xlu0 %272
        %v277 = vunpack.c.l.b16 %v261
        %v278 = vunpack.c.l.b16 %v262
        %v279 = vpack.c.b16 %v278, %v277
        %vm280 = vcmask 31744
        %v282 = vsel %vm280, %v279, 0
        %vm284 = vcmask 1041408
        %v286 = vsel %vm284, %v259, 0
        %v289 = vsel %vm284, %v260, 0
        %291 = vmatprep.subr.bf16.mxu0 %v289
        %292 = vmatpush1.bf16.msra.mxu0 %v286
        %293 = vmatprep.subr.bf16.mxu0 0
        %294 = vmatpush1.bf16.msra.mxu0 0
        %295 = vmatprep.subr.bf16.mxu0 0
        %296 = vmatpush1.bf16.msra.mxu0 0
        %297 = vmatprep.subr.bf16.mxu0 0
        %298 = vmatpush1.bf16.msra.mxu0 0
        %299 = vmatprep.subr.bf16.mxu0 0
        %300 = vmatpush1.bf16.msra.mxu0 0
        %301 = vmatprep.subr.bf16.mxu0 0
        %302 = vmatpush1.bf16.msra.mxu0 0
        %303 = vmatprep.subr.bf16.mxu0 0
        %304 = vmatpush1.bf16.msra.mxu0 0
        %305 = vmatprep.subr.bf16.mxu0 0
        %306 = vmatpush1.bf16.msra.mxu0 0
        %307 = vmatprep.subr.bf16.mxu0 0
        %308 = vmatpush1.bf16.msra.mxu0 0
        %309 = vmatprep.subr.bf16.mxu0 0
        %310 = vmatpush1.bf16.msra.mxu0 0
        %311 = vmatprep.subr.bf16.mxu0 0
        %312 = vmatpush1.bf16.msra.mxu0 0
        %313 = vmatprep.subr.bf16.mxu0 0
        %314 = vmatpush1.bf16.msra.mxu0 0
        %315 = vmatprep.subr.bf16.mxu0 0
        %316 = vmatpush1.bf16.msra.mxu0 0
        %317 = vmatprep.subr.bf16.mxu0 0
        %318 = vmatpush1.bf16.msra.mxu0 0
        %319 = vmatprep.subr.bf16.mxu0 0
        %320 = vmatpush1.bf16.msra.mxu0 0
        %321 = vmatprep.subr.bf16.mxu0 0
        %322 = vmatpush1.bf16.msra.mxu0 0
        %323 = vmatprep.mubr.bf16.mxu0 0
        %324 = vmatmul.mubr.bf16.gmra.mrb[0].mxu0 %v282
        %v325 = vpop.f32.mrb[0].mxu0
        %v326 = vadd.f32 %v268, %v325
        %v327 = vpop.f32.mrb[0].mxu0
        %v328 = vadd.f32 %v268, %v327
        %v329 = vpop.f32.mrb[0].mxu0
        %v330 = vadd.f32 %v273, %v329
        %v331 = vpop.f32.mrb[0].mxu0
        %v332 = vadd.f32 %v273, %v331
        %333 = vdwg.mxu0
        %v334 = vmax.f32 %v326, 0.0
        %v335 = vmax.f32 %v328, 0.0
        %v336 = vmax.f32 %v330, 0.0
        %v337 = vmax.f32 %v332, 0.0
        %v338 = vld [vmem:[%s3] sm:$0xf]
        %v339 = vld [vmem:[%s3 + $0x4] sm:$0xf]
        %v340 = vpack.c.bf16 %v336, %v334
        %v341 = vpack.c.bf16 %v337, %v335
        %v342 = vld [vmem:[%s4] sm:$0xff]
        %v343 = vld [vmem:[%s4 + $0x8] sm:$0xff]
        %345 = vset.pattern.permute.xlu0 0
        %346 = vperm.xlu0 %345, %v342
        %v347 = vpop.permute.xlu0 %346
        %350 = vset.pattern.permute.xlu0 0
        %351 = vperm.xlu0 %350, %v343
        %v352 = vpop.permute.xlu0 %351
        %v356 = vunpack.c.l.b16 %v338
        %v357 = vunpack.c.l.b16 %v339
        %v358 = vpack.c.b16 %v357, %v356
        %vm359 = vcmask 130048
        %v361 = vsel %vm359, %v358, 0
        %363 = vmatprep.subr.bf16.mxu0 %v341
        %364 = vmatpush1.bf16.msra.mxu0 %v340
        %365 = vmatprep.subr.bf16.mxu0 0
        %366 = vmatpush1.bf16.msra.mxu0 0
        %367 = vmatprep.subr.bf16.mxu0 0
        %368 = vmatpush1.bf16.msra.mxu0 0
        %369 = vmatprep.subr.bf16.mxu0 0
        %370 = vmatpush1.bf16.msra.mxu0 0
        %371 = vmatprep.subr.bf16.mxu0 0
        %372 = vmatpush1.bf16.msra.mxu0 0
        %373 = vmatprep.subr.bf16.mxu0 0
        %374 = vmatpush1.bf16.msra.mxu0 0
        %375 = vmatprep.subr.bf16.mxu0 0
        %376 = vmatpush1.bf16.msra.mxu0 0
        %377 = vmatprep.subr.bf16.mxu0 0
        %378 = vmatpush1.bf16.msra.mxu0 0
        %379 = vmatprep.subr.bf16.mxu0 0
        %380 = vmatpush1.bf16.msra.mxu0 0
        %381 = vmatprep.subr.bf16.mxu0 0
        %382 = vmatpush1.bf16.msra.mxu0 0
        %383 = vmatprep.subr.bf16.mxu0 0
        %384 = vmatpush1.bf16.msra.mxu0 0
        %385 = vmatprep.subr.bf16.mxu0 0
        %386 = vmatpush1.bf16.msra.mxu0 0
        %387 = vmatprep.subr.bf16.mxu0 0
        %388 = vmatpush1.bf16.msra.mxu0 0
        %389 = vmatprep.subr.bf16.mxu0 0
        %390 = vmatpush1.bf16.msra.mxu0 0
        %391 = vmatprep.subr.bf16.mxu0 0
        %392 = vmatpush1.bf16.msra.mxu0 0
        %393 = vmatprep.subr.bf16.mxu0 0
        %394 = vmatpush1.bf16.msra.mxu0 0
        %395 = vmatprep.mubr.bf16.mxu0 0
        %396 = vmatmul.mubr.bf16.gmra.mrb[0].mxu0 %v361
        %v397 = vpop.f32.mrb[0].mxu0
        %v398 = vadd.f32 %v347, %v397
        %v399 = vpop.f32.mrb[0].mxu0
        %v400 = vadd.f32 %v347, %v399
        %v401 = vpop.f32.mrb[0].mxu0
        %v402 = vadd.f32 %v352, %v401
        %v403 = vpop.f32.mrb[0].mxu0
        %v404 = vadd.f32 %v352, %v403
        %405 = vdwg.mxu0
        %v406 = vmax.f32 %v398, 0.0
        %v407 = vmax.f32 %v400, 0.0
        %v408 = vmax.f32 %v402, 0.0
        %v409 = vmax.f32 %v404, 0.0
        %410 = vst [vmem:[%s242] sm:$0xff] %v406
        %411 = vst [vmem:[%s242 + $0x8] sm:$0xff] %v407
        %412 = vst [vmem:[%s242 + $0x10] sm:$0xff] %v408
        %413 = vst [vmem:[%s242 + $0x18] sm:$0xff] %v409
        %s414 = sand.u32 %s153, 1
        %s415 = scalar_lea.sflag [#allocation3], %s414
        %s416 = sand.u32 %s153, 1
        %s417 = smul.addr %s416, 32
        %s418 = scalar_lea.vmem [#allocation2], %s417
        // Predicated region
        $region41: #{tpu_custom_call.1} parent=39 // pred_check
          %p419 = pneg %p163
        $region42: #{tpu_custom_call.1} parent=39 // pred_check_branch
          %421 = sbr.rel (%p419) target = $region44
        $region43: #{tpu_custom_call.1} parent=39 // pred_region
          %s422 = smul.u32 2, %s24
          %s424 = ssub.s32 512, 512
          %425 = vsyncadd %s415, %s424
          %s426 = smul.addr %s23, 4
          %s427 = sadd.s32 %s422, %s426
          %s428 = smul.addr %s427, 128
          %s429 = scalar_lea.hbm %s5, %s428
          %s430 = sshll.u32 %s418, 4
          %s431 = int_to_ptr.vmem [resolvable:$true] %s430
          %436 = dma.vmem_to_hbm [thread:$0]  %s431, 512, %s429, %s415, 256, 256, 16
        $region44: #{tpu_custom_call.1} parent=39 // pred_fallthru
          _
      $region40: #{tpu_custom_call.1} parent=5 // pred_fallthru
        _
      %p437 = scmp.le.s32.totalorder 2, %s14
      // Predicated region
      $region45: #{tpu_custom_call.1} parent=5 // pred_check
        %p438 = pneg %p437
      $region46: #{tpu_custom_call.1} parent=5 // pred_check_branch
        %440 = sbr.rel (%p438) target = $region48
      $region47: #{tpu_custom_call.1} parent=5 // pred_region
        %s441 = ssub.s32 %s14, 2
        // Predicated region
        $region49: #{tpu_custom_call.1} parent=47 // pred_check
          %p442 = pneg %p169
        $region50: #{tpu_custom_call.1} parent=47 // pred_check_branch
          %444 = sbr.rel (%p442) target = $region52
        $region51: #{tpu_custom_call.1} parent=47 // pred_region
          %s445 = sand.u32 %s154, 1
          %s446 = scalar_lea.sflag [#allocation3], %s445
          %s447 = sand.u32 %s154, 1
          %s448 = smul.addr %s447, 32
          %s449 = scalar_lea.vmem [#allocation2], %s448
          %450 = dma.done %s446, 512
        $region52: #{tpu_custom_call.1} parent=47 // pred_fallthru
          _
      $region48: #{tpu_custom_call.1} parent=5 // pred_fallthru
        _
    $region6: #{tpu_custom_call.1} parent=1 // loop_footer
      %s18 = sadd.s32 1, %s14
    $region7: #{tpu_custom_call.1} parent=1 // loop_footer_branch
      %13 = sbr.rel target = $region3
    $region8: #{tpu_custom_call.1} parent=1 // loop_exit
      _
    %451 = vsyncpa [#allocation3], 1
    %s452 = scalar_lea.sflag [#allocation3], 1
    %453 = vsyncpa %s452, 1

</llo_original>
